<compile_context>
chip_gen: v5e
topology: v5e:2x2
jax: 0.10.0
libtpu: 0.0.40
codegen_flags: <defaults>
</compile_context>

<pallas_src>
import itertools
import math

import numpy as np
import jax
import jax.numpy as jnp
from jax.experimental import pallas as pl
from jax.experimental.pallas import tpu as pltpu


# --------------------------------------------------------------------------- #
# Generation-aware VMEM budget
# --------------------------------------------------------------------------- #
def _default_vmem_limit():
    try:
        cap = int(pltpu.get_tpu_info().vmem_capacity_bytes)
    except Exception:
        cap = 64 * 1024 * 1024            # conservative (v7x-sized) fallback
    return max(32 * 1024 * 1024, int(0.6 * cap))


VMEM_LIMIT_BYTES = _default_vmem_limit()
_PLAN_BUDGET = int(0.8 * VMEM_LIMIT_BYTES)   # leave headroom for compiler scratch


def _tile_candidates(dim, quantum, max_tile):
    """Tile sizes for one axis, best first: full extent (if small enough), then
    descending `quantum`-multiples that divide `dim` (keeps lanes/sublanes dense;
    never returns a partial, non-aligned divisor)."""
    cands = []
    if dim <= max_tile:
        cands.append(dim)
    t = (min(max_tile, dim - 1) // quantum) * quantum
    while t >= quantum:
        if dim % t == 0 and t not in cands:
            cands.append(t)
        t -= quantum
    if not cands:
        cands.append(dim)  # TODO(synk): pad awkward channel counts to 128 upstream
    return cands


def _first_fit(cand_lists, est, budget):
    """Pick the first candidate tuple (nested-loop order, best-first) fitting budget."""
    for choice in itertools.product(*cand_lists):
        if est(*choice) <= budget:
            return choice
    return tuple(c[-1] for c in cand_lists)


# --------------------------------------------------------------------------- #
# Pallas kernels
# --------------------------------------------------------------------------- #
def _conv3x3_bn_relu_kernel(xpad_ref, w_ref, s_ref, b_ref, o_ref, acc_ref):
    # xpad_ref: (BB, H+2, W+2, TK) bf16    w_ref: (9, TK, TN) bf16
    # s_ref/b_ref: (1, TN) f32             o_ref: (BB, H, W, TN)
    # acc_ref: (BB, H, W, TN) f32 scratch; grid = (B//BB, NT, KT), Cin axis last.
    BB, H, W, TN = o_ref.shape
    k = pl.program_id(2)

    @pl.when(k == 0)
    def _():
        acc_ref[...] = jnp.zeros_like(acc_ref)

    # Accumulate each shifted tap straight into the VMEM accumulator so no
    # full-tile f32 value stays live across all 9 matmuls (avoids vreg spills).
    for bb in range(BB):
        for dy in range(3):
            for dx in range(3):
                tap = xpad_ref[bb, dy:dy + H, dx:dx + W, :]        # (H, W, TK)
                acc_ref[bb] += jnp.dot(tap, w_ref[3 * dy + dx],
                                       preferred_element_type=jnp.float32)

    @pl.when(k == pl.num_programs(2) - 1)
    def _():
        for bb in range(BB):
            y = acc_ref[bb] * s_ref[...] + b_ref[...]              # folded BN (eval)
            o_ref[bb] = jnp.maximum(y, 0.0).astype(o_ref.dtype)    # ReLU


def _matmul_bn_relu_mask_kernel(x_ref, w_ref, s_ref, b_ref, m_ref, o_ref, acc_ref):
    # x_ref: (TM, TK) bf16   w_ref: (TK, TN) bf16   s/b: (1, TN) f32
    # m_ref: (TM, TN) f32 block-diagonal mask       o_ref: (TM, TN)
    # acc_ref: (TM, TN) f32 scratch; grid = (MT, NT, KT), reduction last.
    k = pl.program_id(2)

    @pl.when(k == 0)
    def _():
        acc_ref[...] = jnp.zeros_like(acc_ref)

    acc_ref[...] += jnp.dot(x_ref[...], w_ref[...],
                            preferred_element_type=jnp.float32)

    @pl.when(k == pl.num_programs(2) - 1)
    def _():
        y = acc_ref[...] * s_ref[...] + b_ref[...]                 # folded BN (eval)
        o_ref[...] = (jnp.maximum(y, 0.0) * m_ref[...]).astype(o_ref.dtype)


def _resample_kernel(m_ref, x_ref, o_ref):
    # m_ref: (TM, K) bf16   x_ref: (1, K, TC) bf16   o_ref: (1, TM, TC)
    o_ref[0] = jnp.dot(m_ref[...], x_ref[0],
                       preferred_element_type=jnp.float32).astype(o_ref.dtype)


# --------------------------------------------------------------------------- #
# Wrappers
# --------------------------------------------------------------------------- #
def _conv_plan(B, H, W, Cin, Cout, out_bytes):
    """(batch-block, Cin-tile, Cout-tile) so the double-buffered working set fits
    the VMEM budget.  Bigger Cout tiles cut re-streaming of the padded input;
    bigger batch blocks cut conv-weight re-reads."""
    def est(tn, bb, tk):
        xpad = 2 * bb * (H + 2) * (W + 2) * tk * 2     # bf16 input, double buffered
        wgt = 2 * 9 * tk * tn * 2
        out = 2 * bb * H * W * tn * out_bytes
        acc = bb * H * W * tn * 4
        return xpad + wgt + out + acc
    tn, bb, tk = _first_fit(
        [_tile_candidates(Cout, 128, 1024),
         [d for d in range(B, 0, -1) if B % d == 0],
         _tile_candidates(Cin, 128, 1024)],
        est, _PLAN_BUDGET)
    return bb, tk, tn


def conv3x3_bn_relu(x_nhwc, w9, scale, bias, out_dtype=jnp.float32):
    """3x3 conv (stride 1, pad 1, no bias) + folded BN + ReLU.  NHWC in/out."""
    B, H, W, Cin = x_nhwc.shape
    Cout = w9.shape[-1]
    xpad = jnp.pad(x_nhwc.astype(jnp.bfloat16), ((0, 0), (1, 1), (1, 1), (0, 0)))
    # TODO(synk): the zero-padding is materialized in HBM; a halo index_map with
    # in-kernel edge masking would avoid the extra copy for very large inputs.

    BB, TK, TN = _conv_plan(B, H, W, Cin, Cout, np.dtype(out_dtype).itemsize)
    KT = Cin // TK
    NT = Cout // TN

    return pl.pallas_call(
        _conv3x3_bn_relu_kernel,
        out_shape=jax.ShapeDtypeStruct((B, H, W, Cout), out_dtype),
        grid=(B // BB, NT, KT),
        in_specs=[
            pl.BlockSpec((BB, H + 2, W + 2, TK), lambda b, n, k: (b, 0, 0, k)),
            pl.BlockSpec((9, TK, TN), lambda b, n, k: (0, k, n)),
            pl.BlockSpec((1, TN), lambda b, n, k: (0, n)),
            pl.BlockSpec((1, TN), lambda b, n, k: (0, n)),
        ],
        out_specs=pl.BlockSpec((BB, H, W, TN), lambda b, n, k: (b, 0, 0, n)),
        scratch_shapes=[pltpu.VMEM((BB, H, W, TN), jnp.float32)],
        compiler_params=pltpu.CompilerParams(
            dimension_semantics=("parallel", "parallel", "arbitrary"),
            vmem_limit_bytes=VMEM_LIMIT_BYTES),
    )(xpad, w9, scale, bias)


def matmul_bn_relu_mask(x, w, scale, bias, mask, out_dtype=jnp.bfloat16):
    """out = relu((x @ w) * scale + bias) * mask.  Fused head-conv matmul."""
    M, K = x.shape
    N = w.shape[1]
    ob = np.dtype(out_dtype).itemsize

    def est(tn, tm, tk):
        return (2 * (tm * tk * 2 + tk * tn * 2 + tm * tn * 4 + tm * tn * ob)
                + tm * tn * 4)
    TN, TM, TK = _first_fit(
        [_tile_candidates(N, 128, 512),
         _tile_candidates(M, 8, 1024),
         _tile_candidates(K, 128, 2048)],
        est, _PLAN_BUDGET)

    return pl.pallas_call(
        _matmul_bn_relu_mask_kernel,
        out_shape=jax.ShapeDtypeStruct((M, N), out_dtype),
        grid=(M // TM, N // TN, K // TK),
        in_specs=[
            pl.BlockSpec((TM, TK), lambda i, j, k: (i, k)),
            pl.BlockSpec((TK, TN), lambda i, j, k: (k, j)),
            pl.BlockSpec((1, TN), lambda i, j, k: (0, j)),
            pl.BlockSpec((1, TN), lambda i, j, k: (0, j)),
            pl.BlockSpec((TM, TN), lambda i, j, k: (i, j)),
        ],
        out_specs=pl.BlockSpec((TM, TN), lambda i, j, k: (i, j)),
        scratch_shapes=[pltpu.VMEM((TM, TN), jnp.float32)],
        compiler_params=pltpu.CompilerParams(
            dimension_semantics=("parallel", "parallel", "arbitrary"),
            vmem_limit_bytes=VMEM_LIMIT_BYTES),
    )(x.astype(jnp.bfloat16), w.astype(jnp.bfloat16),
      scale.astype(jnp.float32), bias.astype(jnp.float32),
      mask.astype(jnp.float32))


def resample_matmul(m, x, out_dtype=jnp.bfloat16):
    """out[b] = m @ x[b].   m: (Mout, K),  x: (B, K, C)  ->  (B, Mout, C).
    Tiled over output rows and channels so blocks stay small enough to pipeline
    (the shared reduction dim K is kept whole: K = H*W or sum(b^2) for PPM)."""
    B, K, C = x.shape
    Mout = m.shape[0]
    ob = np.dtype(out_dtype).itemsize

    def est(tc, tm):
        return 2 * (tm * K * 2 + K * tc * 2 + tm * tc * ob)
    TC, TM = _first_fit(
        [_tile_candidates(C, 128, 512),
         _tile_candidates(Mout, 8, 1024)],
        est, _PLAN_BUDGET)

    return pl.pallas_call(
        _resample_kernel,
        out_shape=jax.ShapeDtypeStruct((B, Mout, C), out_dtype),
        grid=(B, Mout // TM, C // TC),
        in_specs=[
            pl.BlockSpec((TM, K), lambda b, mi, ci: (mi, 0)),
            pl.BlockSpec((1, K, TC), lambda b, mi, ci: (b, 0, ci)),
        ],
        out_specs=pl.BlockSpec((1, TM, TC), lambda b, mi, ci: (b, mi, ci)),
        compiler_params=pltpu.CompilerParams(
            dimension_semantics=("parallel", "parallel", "parallel"),
            vmem_limit_bytes=VMEM_LIMIT_BYTES),
    )(m.astype(jnp.bfloat16), x.astype(jnp.bfloat16))


# --------------------------------------------------------------------------- #
# Separable matrices reproducing AdaptiveAvgPool2d and bilinear interpolate
# --------------------------------------------------------------------------- #
def adaptive_pool_matrix(out_size, in_size):
    """Averaging matrix matching nn.AdaptiveAvgPool2d along one axis."""
    m = np.zeros((out_size, in_size), np.float32)
    for p in range(out_size):
        s = (p * in_size) // out_size
        e = math.ceil((p + 1) * in_size / out_size)
        m[p, s:e] = 1.0 / (e - s)
    return m


def bilinear_matrix(out_size, in_size):
    """Matrix matching F.interpolate(mode='bilinear', align_corners=False)."""
    m = np.zeros((out_size, in_size), np.float32)
    scale = in_size / out_size
    for i in range(out_size):
        src = (i + 0.5) * scale - 0.5
        if src < 0.0:
            src = 0.0
        i0 = min(int(math.floor(src)), in_size - 1)
        frac = src - i0
        i1 = min(i0 + 1, in_size - 1)
        m[i, i0] += 1.0 - frac
        m[i, i1] += frac
    return m


# --------------------------------------------------------------------------- #
# Parameter / matrix preparation (hoisted out of the forward pass)
# --------------------------------------------------------------------------- #
def _prep_conv(w, scale, bias):
    Cout, Cin = w.shape[0], w.shape[1]
    # (Cout, Cin, 3, 3) -> (kh, kw, Cin, Cout) -> (9, Cin, Cout), bf16 for MXU.
    w9 = jnp.transpose(w, (2, 3, 1, 0)).reshape(9, Cin, Cout).astype(jnp.bfloat16)
    return dict(w9=w9,
                scale=jnp.asarray(scale, jnp.float32).reshape(1, Cout),
                bias=jnp.asarray(bias, jnp.float32).reshape(1, Cout))


def prepare_ppm_params(params, H, W):
    """One-time prep: bf16 weights, folded BN, fused pool+im2col / upsample mats."""
    heads = params["heads"]
    nh = len(heads)
    nf = heads[0]["w"].shape[0]
    C = heads[0]["w"].shape[1]

    g_blocks, up_blocks, w_blocks, s_blocks, b_blocks = [], [], [], [], []
    boffs, boff = [], 0
    for head in heads:
        b = head["bin"]
        boffs.append(boff)
        P = np.kron(adaptive_pool_matrix(b, H), adaptive_pool_matrix(b, W))  # (b*b, H*W)
        # Fused adaptive-pool + im2col: row p*9 + (3*dy+dx) is the pooled row of
        # the (dy,dx)-shifted neighbor of output pixel p, or zero (conv padding).
        G = np.zeros((b * b * 9, H * W), np.float32)
        for py in range(b):
            for px in range(b):
                p = py * b + px
                for dy in range(3):
                    for dx in range(3):
                        qy, qx = py + dy - 1, px + dx - 1
                        if 0 <= qy < b and 0 <= qx < b:
                            G[p * 9 + 3 * dy + dx] = P[qy * b + qx]
        g_blocks.append(G)
        up_blocks.append(np.kron(bilinear_matrix(H, b), bilinear_matrix(W, b)))  # (H*W, b*b)
        # (nf, C, 3, 3) -> (kh, kw, C, nf) -> (9*C, nf): tap-major rows, matching G.
        w_np = np.asarray(head["w"], np.float32)
        w_blocks.append(np.transpose(w_np, (2, 3, 1, 0)).reshape(9 * C, nf))
        s_blocks.append(np.asarray(head["scale"], np.float32))
        b_blocks.append(np.asarray(head["bias"], np.float32))
        boff += b * b
    S = boff  # sum of b^2

    # Block-diagonal mask: head h's rows only feed head h's nf output channels.
    mask = np.zeros((S, nh * nf), np.float32)
    for h, head in enumerate(heads):
        b = head["bin"]
        mask[boffs[h]:boffs[h] + b * b, h * nf:(h + 1) * nf] = 1.0

    f = params["final"]
    return dict(
        sum_b2=S, num_heads=nh, nf=nf,
        G_all=jnp.asarray(np.concatenate(g_blocks, axis=0), jnp.bfloat16),   # (9*S, H*W)
        K_all=jnp.asarray(np.concatenate(up_blocks, axis=1), jnp.bfloat16),  # (H*W, S)
        W_heads=jnp.asarray(np.concatenate(w_blocks, axis=1), jnp.bfloat16), # (9*C, nh*nf)
        scale_cat=jnp.asarray(np.concatenate(s_blocks)).reshape(1, nh * nf),
        bias_cat=jnp.asarray(np.concatenate(b_blocks)).reshape(1, nh * nf),
        mask=jnp.asarray(mask, jnp.float32),
        final=_prep_conv(f["w"], f["scale"], f["bias"]),
    )


# --------------------------------------------------------------------------- #
# PPM forward (Pallas)
# --------------------------------------------------------------------------- #
def ppm_forward(x, prep):
    B, C, H, W = x.shape
    S = prep["sum_b2"]
    # NCHW -> channels-last once at the boundary.
    x_flat = jnp.transpose(x, (0, 2, 3, 1)).reshape(B, H * W, C)

    # Fused adaptive-avg-pool + im2col for ALL heads: x is read once.
    cols = resample_matmul(prep["G_all"], x_flat)          # (B, 9*S, C) bf16
    cols = cols.reshape(B * S, 9 * C)                      # tap-major contraction dim

    # All head 3x3 convs + BN + ReLU + block-diag mask as ONE MXU matmul
    # (M = B*S rows; weights streamed once, not per batch / per head).
    mask = jnp.tile(prep["mask"], (B, 1))                  # (B*S, nh*nf)
    y = matmul_bn_relu_mask(cols, prep["W_heads"], prep["scale_cat"],
                            prep["bias_cat"], mask)        # (B*S, nh*nf) bf16
    y = y.reshape(B, S, -1)

    # Fused bilinear upsample of all heads + channel concat: one matmul.
    up_cat = resample_matmul(prep["K_all"], y)             # (B, H*W, nh*nf) bf16
    cat_nhwc = up_cat.reshape(B, H, W, -1)

    f = prep["final"]
    out_nhwc = conv3x3_bn_relu(cat_nhwc, f["w9"], f["scale"], f["bias"],
                               out_dtype=jnp.float32)
    return jnp.transpose(out_nhwc, (0, 3, 1, 2))           # back to NCHW


# --------------------------------------------------------------------------- #
# Parameter init (folded eval-mode BatchNorm)
# --------------------------------------------------------------------------- #
def _bn_fold(kg, kb, km, kv, n, eps=1e-5):
    gamma = 1.0 + 0.1 * jax.random.normal(kg, (n,), jnp.float32)
    beta = 0.05 * jax.random.normal(kb, (n,), jnp.float32)
    mean = 0.1 * jax.random.normal(km, (n,), jnp.float32)
    var = 0.5 + jax.random.uniform(kv, (n,), jnp.float32)
    scale = gamma / jnp.sqrt(var + eps)
    bias = beta - mean * scale
    return scale, bias


def init_params(key, ni, bins):
    # TODO(synk): BatchNorm training-mode batch statistics are not reproduced;
    # eval-mode running stats are folded into (scale, bias).
    nf = ni // len(bins)
    keys = jax.random.split(key, len(bins) + 1)
    heads = []
    for b, k in zip(bins, keys[:-1]):
        kw, kg, kb, km, kv = jax.random.split(k, 5)
        w = 0.1 * jax.random.normal(kw, (nf, ni, 3, 3), jnp.float32)
        scale, bias = _bn_fold(kg, kb, km, kv, nf)
        heads.append(dict(bin=b, w=w, scale=scale, bias=bias))
    kw, kg, kb, km, kv = jax.random.split(keys[-1], 5)
    w = 0.1 * jax.random.normal(kw, (ni, ni, 3, 3), jnp.float32)
    scale, bias = _bn_fold(kg, kb, km, kv, ni)
    return dict(heads=heads, final=dict(w=w, scale=scale, bias=bias))


# --------------------------------------------------------------------------- #
# Pure-JAX reference (numerical sanity check only)
# --------------------------------------------------------------------------- #
def _ref_conv_bn_relu(x, w, scale, bias):
    y = jax.lax.conv_general_dilated(
        x, w, window_strides=(1, 1), padding=((1, 1), (1, 1)),
        dimension_numbers=("NCHW", "OIHW", "NCHW"),
        precision=jax.lax.Precision.HIGHEST)
    y = y * scale[None, :, None, None] + bias[None, :, None, None]
    return jnp.maximum(y, 0.0)


def ppm_reference(x, params):
    B, C, H, W = x.shape
    hp = jax.lax.Precision.HIGHEST
    outs = []
    for head in params["heads"]:
        b = head["bin"]
        Ph, Pw = adaptive_pool_matrix(b, H), adaptive_pool_matrix(b, W)
        pooled = jnp.einsum("hp,bcpq,wq->bchw", Ph, x, Pw, precision=hp)
        y = _ref_conv_bn_relu(pooled, head["w"], head["scale"], head["bias"])
        Rh, Rw = bilinear_matrix(H, b), bilinear_matrix(W, b)
        outs.append(jnp.einsum("hp,bcpq,wq->bchw", Rh, y, Rw, precision=hp))
    cat = jnp.concatenate(outs, axis=1)
    f = params["final"]
    return _ref_conv_bn_relu(cat, f["w"], f["scale"], f["bias"])


# --------------------------------------------------------------------------- #
if __name__ == "__main__":
    B, ni, H, W = 2, 8, 16, 16
    bins = (1, 2, 3, 6)

    key = jax.random.PRNGKey(0)
    kx, kp = jax.random.split(key)
    x = jax.random.normal(kx, (B, ni, H, W), jnp.float32)
    params = init_params(kp, ni, bins)
    prep = prepare_ppm_params(params, H, W)

    out = jax.block_until_ready(ppm_forward(x, prep))
    assert out.shape == (B, ni, H, W), out.shape

    ref = jax.block_until_ready(ppm_reference(x, params))
    # bf16 MXU inputs (f32 accumulation) => slightly looser tolerance than pure f32.
    np.testing.assert_allclose(np.asarray(out), np.asarray(ref), rtol=2e-2, atol=2e-2)

    print("KERNEL_OK")
</pallas_src>

<mosaic_0001>
module attributes {stable_mosaic.version = 11 : i64} {
  func.func @_resample_kernel(%arg0: i32, %arg1: i32, %arg2: i32, %arg3: memref<450x256xbf16, #tpu.memory_space<vmem>>, %arg4: memref<1x256x8xbf16, #tpu.memory_space<vmem>>, %arg5: memref<1x450x8xbf16, #tpu.memory_space<vmem>>) attributes {dimension_semantics = [#tpu.dimension_semantics<parallel>, #tpu.dimension_semantics<parallel>, #tpu.dimension_semantics<parallel>], iteration_bounds = array<i64: 2, 1, 1>, scalar_prefetch = 0 : i64, scratch_operands = 0 : i64, tpu.core_type = #tpu.core_type<tc>, window_params = [{transform_indices = @transform_0, window_bounds = array<i64: 450, 256>}, {transform_indices = @transform_1, window_bounds = array<i64: 1, 256, 8>}, {transform_indices = @transform_2, window_bounds = array<i64: 1, 450, 8>}]} {
    %c0 = arith.constant 0 : index
    %c0_0 = arith.constant 0 : index
    %0 = vector.load %arg3[%c0, %c0_0] : memref<450x256xbf16, #tpu.memory_space<vmem>>, vector<450x256xbf16>
    %c0_1 = arith.constant 0 : index
    %c0_2 = arith.constant 0 : index
    %c0_3 = arith.constant 0 : index
    %1 = vector.load %arg4[%c0_1, %c0_2, %c0_3] : memref<1x256x8xbf16, #tpu.memory_space<vmem>>, vector<1x256x8xbf16>
    %2 = vector.shape_cast %1 : vector<1x256x8xbf16> to vector<256x8xbf16>
    %cst = arith.constant dense<0.000000e+00> : vector<450x8xf32>
    %3 = tpu.matmul %0, %2, %cst {dimension_numbers = #tpu.dot_dimension_numbers<[1], [0], [0], [1], [0, 0, 1, 1], [], []>} : vector<450x256xbf16>, vector<256x8xbf16>, vector<450x8xf32> -> vector<450x8xf32>
    %4 = arith.truncf %3 : vector<450x8xf32> to vector<450x8xbf16>
    %c0_4 = arith.constant 0 : index
    %c0_5 = arith.constant 0 : index
    %c0_6 = arith.constant 0 : index
    %5 = vector.load %arg5[%c0_4, %c0_5, %c0_6] : memref<1x450x8xbf16, #tpu.memory_space<vmem>>, vector<1x450x8xbf16>
    %6 = vector.shape_cast %5 : vector<1x450x8xbf16> to vector<450x8xbf16>
    %7 = vector.shape_cast %4 : vector<450x8xbf16> to vector<1x450x8xbf16>
    tpu.vector_store %arg5[%c0_4, %c0_5, %c0_6], %7 {strides = array<i32>} : memref<1x450x8xbf16, #tpu.memory_space<vmem>>, vector<1x450x8xbf16>,
    return
  }
  func.func @transform_0(%arg0: i32, %arg1: i32, %arg2: i32) -> (i32, i32) {
    %c0_i32 = arith.constant 0 : i32
    %c0_i32_0 = arith.constant 0 : i32
    return %arg1, %c0_i32 : i32, i32
  }
  func.func @transform_1(%arg0: i32, %arg1: i32, %arg2: i32) -> (i32, i32, i32) {
    %c0_i32 = arith.constant 0 : i32
    %c0_i32_0 = arith.constant 0 : i32
    return %arg0, %c0_i32, %arg2 : i32, i32, i32
  }
  func.func @transform_2(%arg0: i32, %arg1: i32, %arg2: i32) -> (i32, i32, i32) {
    %c0_i32 = arith.constant 0 : i32
    return %arg0, %arg1, %arg2 : i32, i32, i32
  }
}

</mosaic_0001>

<llo_original>
// kernel: tpu_custom_call.1
$region0: #{tpu_custom_call.1}
  #allocation0 [shape = 'u32[]', space=smem, size = 0x4, offset = 0x4, fixed_abs, tag = 'smem constant byte address 0x4 - core index']
  #allocation1 [shape = 'u32[72,128]{1,0:T(1,128)}', space=vmem, size = 0x9000, scoped, tag = 'internal scratch']
  %s0 = inlined_call_operand.hbm [shape: bf16[450,256], index: 0, kind: input, shape index: {}]
  %s1 = inlined_call_operand.vmem [shape: bf16[2,256,8], index: 1, kind: input, shape index: {}]
  %s2 = inlined_call_operand.vmem [shape: bf16[2,450,8], index: 2, kind: output, shape index: {}]
  %s3 = sld [smem:[#allocation0]]
  $region45: #{tpu_custom_call.1} parent=0
    _
  %s5 = ssub.s32 1, %s3
  %s6 = scalar_select 0, %s5, %s3
  $region1: #{tpu_custom_call.1} parent=0
    #allocation2 [shape = 'u8[233472]{0}', space=vmem, size = 0x39000, scoped, tag = 'input window, operand 0, single buffered']
    #allocation3 [shape = 's32[2]{0}', space=sflag, size = 0x8, scoped, tag = 'scoped memory for tpu_custom_call.1']
    %7 = vsyncpa [#allocation3], 0
    loop: start=0, step=1, limit=4
    $region2: #{tpu_custom_call.1} parent=1 // loop_pre_header
      _
    $region3: #{tpu_custom_call.1} parent=1 // loop_header
      %s9 = sphi 0, %s13
      %p10 = scmp.ge.s32.totalorder %s9, 4
      %s16 = sphi 0, %s35
      %s17 = sphi 0, %s31
      %s18 = sphi 0, %s27
      %s19 = sphi 0, %s16
      %s20 = sphi 0, %s17
      %s21 = sphi 0, %s18
      %s22 = sphi 0, %s19
      %s23 = sphi 0, %s20
      %s24 = sphi 0, %s21
      %s38 = sphi 0, %s40
      %s41 = sphi 0, %s38
      %s42 = sphi 0, %s41
      %s58 = sphi 0, %s42
      %s66 = sphi 0, %s68
      %s69 = sphi 0, %s66
      %s70 = sphi 0, %s69
      %s86 = sphi 0, %s70
      %s96 = sphi 0, %s98
      %s99 = sphi 0, %s96
      %s100 = sphi 0, %s99
      %s116 = sphi 0, %s100
    $region4: #{tpu_custom_call.1} parent=1 // loop_header_branch
      %12 = sbr.rel (%p10) target = $region8
    $region5: #{tpu_custom_call.1} parent=1 // loop_body
      %s14 = ssub.s32 %s9, 1
      %s15 = ssub.s32 %s9, 2
      %s25 = sadd.s32 1, %s18
      %p26 = scmp.ge.s32.totalorder %s25, 1
      %s27 = scalar_select %p26, 0, %s25
      %s28 = sadd.s32 1, %s17
      %s29 = scalar_select %p26, %s28, %s17
      %p30 = scmp.ge.s32.totalorder %s29, 1
      %s31 = scalar_select %p30, 0, %s29
      %s32 = sadd.s32 1, %s16
      %s33 = scalar_select %p30, %s32, %s16
      %p34 = scmp.ge.s32.totalorder %s33, 2
      %s35 = scalar_select %p34, 0, %s33
      %s36 = ssub.s32 %s17, %s31
      %p37 = scmp.eq.s32.totalorder %s36, 0
      %s39 = sadd.s32 %s38, 1
      %s40 = scalar_select %p37, %s38, %s39
      %p43 = pneg %p37
      %p44 = scmp.eq.s32.totalorder %s9, 1
      %p45 = por %p43, %p44
      %p46 = scmp.ne.s32.totalorder %s38, %s41
      %p47 = scmp.eq.s32.totalorder %s9, 0
      %p48 = por %p46, %p47
      %p49 = scmp.ne.s32.totalorder %s38, %s41
      %p50 = scmp.eq.s32.totalorder %s14, 1
      %p51 = por %p49, %p50
      %p52 = scmp.ne.s32.totalorder %s41, %s42
      %p53 = scmp.eq.s32.totalorder %s14, 0
      %p54 = por %p52, %p53
      %p55 = scmp.ne.s32.totalorder %s41, %s42
      %p56 = scmp.eq.s32.totalorder %s15, 1
      %p57 = por %p55, %p56
      %p59 = scmp.ne.s32.totalorder %s42, %s58
      %p60 = scmp.eq.s32.totalorder %s15, 0
      %p61 = por %p59, %p60
      %s62 = ssub.s32 %s16, %s35
      %s63 = ssub.s32 %s18, %s27
      %s64 = sor.u32 %s62, %s63
      %p65 = scmp.eq.s32.totalorder %s64, 0
      %s67 = sadd.s32 %s66, 1
      %s68 = scalar_select %p65, %s66, %s67
      %p71 = pneg %p65
      %p72 = scmp.eq.s32.totalorder %s9, 1
      %p73 = por %p71, %p72
      %p74 = scmp.ne.s32.totalorder %s66, %s69
      %p75 = scmp.eq.s32.totalorder %s9, 0
      %p76 = por %p74, %p75
      %p77 = scmp.ne.s32.totalorder %s66, %s69
      %p78 = scmp.eq.s32.totalorder %s14, 1
      %p79 = por %p77, %p78
      %p80 = scmp.ne.s32.totalorder %s69, %s70
      %p81 = scmp.eq.s32.totalorder %s14, 0
      %p82 = por %p80, %p81
      %p83 = scmp.ne.s32.totalorder %s69, %s70
      %p84 = scmp.eq.s32.totalorder %s15, 1
      %p85 = por %p83, %p84
      %p87 = scmp.ne.s32.totalorder %s70, %s86
      %p88 = scmp.eq.s32.totalorder %s15, 0
      %p89 = por %p87, %p88
      %s90 = ssub.s32 %s16, %s35
      %s91 = ssub.s32 %s17, %s31
      %s92 = sor.u32 %s90, %s91
      %s93 = ssub.s32 %s18, %s27
      %s94 = sor.u32 %s92, %s93
      %p95 = scmp.eq.s32.totalorder %s94, 0
      %s97 = sadd.s32 %s96, 1
      %s98 = scalar_select %p95, %s96, %s97
      %p101 = pneg %p95
      %p102 = scmp.eq.s32.totalorder %s9, 1
      %p103 = por %p101, %p102
      %p104 = scmp.ne.s32.totalorder %s96, %s99
      %p105 = scmp.eq.s32.totalorder %s9, 0
      %p106 = por %p104, %p105
      %p107 = scmp.ne.s32.totalorder %s96, %s99
      %p108 = scmp.eq.s32.totalorder %s14, 1
      %p109 = por %p107, %p108
      %p110 = scmp.ne.s32.totalorder %s99, %s100
      %p111 = scmp.eq.s32.totalorder %s14, 0
      %p112 = por %p110, %p111
      %p113 = scmp.ne.s32.totalorder %s99, %s100
      %p114 = scmp.eq.s32.totalorder %s15, 1
      %p115 = por %p113, %p114
      %p117 = scmp.ne.s32.totalorder %s100, %s116
      %p118 = scmp.eq.s32.totalorder %s15, 0
      %p119 = por %p117, %p118
      %p120 = scmp.le.s32.totalorder 1, %s9
      %p121 = scmp.lt.s32.totalorder %s9, 3
      %p122 = pnand %p120, %p121
      %p123 = pneg %p122
      // Predicated region
      $region9: #{tpu_custom_call.1} parent=5 // pred_check
        _
      $region10: #{tpu_custom_call.1} parent=5 // pred_check_branch
        %125 = sbr.rel (%p122) target = $region12
      $region11: #{tpu_custom_call.1} parent=5 // pred_region
        %s126 = ssub.s32 %s9, 1
        // Predicated region
        $region13: #{tpu_custom_call.1} parent=11 // pred_check
          %p127 = pneg %p54
        $region14: #{tpu_custom_call.1} parent=11 // pred_check_branch
          %129 = sbr.rel (%p127) target = $region16
        $region15: #{tpu_custom_call.1} parent=11 // pred_region
          %s130 = smul.u32 57, %s20
          %132 = vsyncadd [#allocation3], 0
          %s133 = smul.addr %s130, 2
          %s134 = smul.addr %s133, 4
          %s135 = scalar_lea.hbm %s0, %s134
          %s136 = sshll.u32 %s135, 4
          %s137 = int_to_ptr.hbm [resolvable:$true] %s136
          %s138 = sshll.u32 [#allocation2], 4
          %s139 = int_to_ptr.vmem [resolvable:$true] %s138
          %144 = dma.hbm_to_vmem [thread:$0]  %s137, 7296, %s139, [#allocation3], 128, 128, 8
        $region16: #{tpu_custom_call.1} parent=11 // pred_fallthru
          _
      $region12: #{tpu_custom_call.1} parent=5 // pred_fallthru
        _
      %p145 = scmp.lt.s32.totalorder %s9, 2
      // Predicated region
      $region17: #{tpu_custom_call.1} parent=5 // pred_check
        %p146 = pneg %p145
      $region18: #{tpu_custom_call.1} parent=5 // pred_check_branch
        %148 = sbr.rel (%p146) target = $region20
      $region19: #{tpu_custom_call.1} parent=5 // pred_region
        // Predicated region
        $region21: #{tpu_custom_call.1} parent=19 // pred_check
          %p149 = pneg %p76
        $region22: #{tpu_custom_call.1} parent=19 // pred_check_branch
          %151 = sbr.rel (%p149) target = $region24
        $region23: #{tpu_custom_call.1} parent=19 // pred_region
          %p152 = scmp.lt.s32.totalorder %s16, 1
          %s153 = scalar_select %p152, %s16, 1
          %p154 = scmp.lt.s32.totalorder %s18, 0
          %s155 = scalar_select %p154, %s18, 0
          %s156 = smul.addr %s153, 32
          %s157 = sadd.s32 %s155, %s156
          %s158 = smul.addr %s157, 4
          %s159 = scalar_lea.vmem %s1, %s158
        $region24: #{tpu_custom_call.1} parent=19 // pred_fallthru
          _
      $region20: #{tpu_custom_call.1} parent=5 // pred_fallthru
        _
      %p160 = scmp.le.s32.totalorder 1, %s9
      %p161 = scmp.lt.s32.totalorder %s9, 3
      %p162 = pnand %p160, %p161
      %p163 = pneg %p162
      // Predicated region
      $region25: #{tpu_custom_call.1} parent=5 // pred_check
        _
      $region26: #{tpu_custom_call.1} parent=5 // pred_check_branch
        %165 = sbr.rel (%p162) target = $region28
      $region27: #{tpu_custom_call.1} parent=5 // pred_region
        %s166 = ssub.s32 %s9, 1
        // Predicated region
        $region29: #{tpu_custom_call.1} parent=27 // pred_check
          %p167 = pneg %p54
        $region30: #{tpu_custom_call.1} parent=27 // pred_check_branch
          %169 = sbr.rel (%p167) target = $region32
        $region31: #{tpu_custom_call.1} parent=27 // pred_region
          %171 = dma.done [#allocation3], 7296
        $region32: #{tpu_custom_call.1} parent=27 // pred_fallthru
          _
        %p172 = pneg %p54
        %p173 = pneg %p51
        %p174 = scmp.lt.s32.totalorder %s19, 1
        %s175 = scalar_select %p174, %s19, 1
        %p176 = scmp.lt.s32.totalorder %s21, 0
        %s177 = scalar_select %p176, %s21, 0
        %s178 = smul.addr %s175, 32
        %s179 = sadd.s32 %s177, %s178
        %s180 = smul.addr %s179, 4
        %s181 = scalar_lea.vmem %s1, %s180
        %p182 = pneg %p82
        %p183 = pneg %p79
        %p184 = pneg %p112
        %p185 = pneg %p109
        %s186 = smul.u32 57, %s20
        %p187 = scmp.lt.s32.totalorder %s19, 1
        %s188 = scalar_select %p187, %s19, 1
        %p189 = scmp.lt.s32.totalorder %s186, 56
        %s190 = scalar_select %p189, %s186, 56
        %p191 = scmp.lt.s32.totalorder %s21, 0
        %s192 = scalar_select %p191, %s21, 0
        %s193 = sadd.s32 %s192, %s190
        %s194 = smul.addr %s188, 57
        %s195 = sadd.s32 %s193, %s194
        %s196 = smul.addr %s195, 4
        %s197 = scalar_lea.vmem %s2, %s196
        %s198 = smul.u32 57, %s20
        %p199 = scmp.lt.s32.totalorder %s19, 1
        %s200 = scalar_select %p199, %s19, 1
        %p201 = scmp.lt.s32.totalorder %s21, 0
        %s202 = scalar_select %p201, %s21, 0
        %s203 = smul.addr %s200, 32
        %s204 = sadd.s32 %s202, %s203
        %s205 = smul.addr %s204, 4
        %s206 = scalar_lea.vmem %s1, %s205
        %s207 = smul.u32 57, %s20
        %p208 = scmp.lt.s32.totalorder %s19, 1
        %s209 = scalar_select %p208, %s19, 1
        %p210 = scmp.lt.s32.totalorder %s207, 56
        %s211 = scalar_select %p210, %s207, 56
        %p212 = scmp.lt.s32.totalorder %s21, 0
        %s213 = scalar_select %p212, %s21, 0
        %s214 = sadd.s32 %s213, %s211
        %s215 = smul.addr %s209, 57
        %s216 = sadd.s32 %s214, %s215
        %s217 = smul.addr %s216, 4
        %s218 = scalar_lea.vmem %s2, %s217
        %s219 = smul.u32 57, %s20
        %v220 = vld [vmem:[#allocation2] sm:$0xff]
        %v221 = vld [vmem:[#allocation2 + $0x8] sm:$0xff]
        %v222 = vld [vmem:[#allocation2 + $0x10] sm:$0xff]
        %v223 = vld [vmem:[#allocation2 + $0x18] sm:$0xff]
        %v224 = vld [vmem:[#allocation2 + $0x20] sm:$0xff]
        %v225 = vld [vmem:[#allocation2 + $0x28] sm:$0xff]
        %v226 = vld [vmem:[#allocation2 + $0x30] sm:$0xff]
        %v227 = vld [vmem:[#allocation2 + $0x38] sm:$0xff]
        %v228 = vld [vmem:[#allocation2 + $0x40] sm:$0xff]
        %v229 = vld [vmem:[#allocation2 + $0x48] sm:$0xff]
        %v230 = vld [vmem:[#allocation2 + $0x50] sm:$0xff]
        %v231 = vld [vmem:[#allocation2 + $0x58] sm:$0xff]
        %v232 = vld [vmem:[#allocation2 + $0x60] sm:$0xff]
        %v233 = vld [vmem:[#allocation2 + $0x68] sm:$0xff]
        %v234 = vld [vmem:[#allocation2 + $0x70] sm:$0xff]
        %v235 = vld [vmem:[#allocation2 + $0x78] sm:$0xff]
        %v236 = vld [vmem:[#allocation2 + $0x80] sm:$0xff]
        %v237 = vld [vmem:[#allocation2 + $0x88] sm:$0xff]
        %v238 = vld [vmem:[#allocation2 + $0x90] sm:$0xff]
        %v239 = vld [vmem:[#allocation2 + $0x98] sm:$0xff]
        %v240 = vld [vmem:[#allocation2 + $0xa0] sm:$0xff]
        %v241 = vld [vmem:[#allocation2 + $0xa8] sm:$0xff]
        %v242 = vld [vmem:[#allocation2 + $0xb0] sm:$0xff]
        %v243 = vld [vmem:[#allocation2 + $0xb8] sm:$0xff]
        %v244 = vld [vmem:[#allocation2 + $0xc0] sm:$0xff]
        %v245 = vld [vmem:[#allocation2 + $0xc8] sm:$0xff]
        %v246 = vld [vmem:[#allocation2 + $0xd0] sm:$0xff]
        %v247 = vld [vmem:[#allocation2 + $0xd8] sm:$0xff]
        %v248 = vld [vmem:[#allocation2 + $0xe0] sm:$0xff]
        %v249 = vld [vmem:[#allocation2 + $0xe8] sm:$0xff]
        %v250 = vld [vmem:[#allocation2 + $0xf0] sm:$0xff]
        %v251 = vld [vmem:[#allocation2 + $0xf8] sm:$0xff]
        %v252 = vld [vmem:[#allocation2 + $0x100] sm:$0xff]
        %v253 = vld [vmem:[#allocation2 + $0x108] sm:$0xff]
        %v254 = vld [vmem:[#allocation2 + $0x110] sm:$0xff]
        %v255 = vld [vmem:[#allocation2 + $0x118] sm:$0xff]
        %v256 = vld [vmem:[#allocation2 + $0x120] sm:$0xff]
        %v257 = vld [vmem:[#allocation2 + $0x128] sm:$0xff]
        %v258 = vld [vmem:[#allocation2 + $0x130] sm:$0xff]
        %v259 = vld [vmem:[#allocation2 + $0x138] sm:$0xff]
        %v260 = vld [vmem:[#allocation2 + $0x140] sm:$0xff]
        %v261 = vld [vmem:[#allocation2 + $0x148] sm:$0xff]
        %v262 = vld [vmem:[#allocation2 + $0x150] sm:$0xff]
        %v263 = vld [vmem:[#allocation2 + $0x158] sm:$0xff]
        %v264 = vld [vmem:[#allocation2 + $0x160] sm:$0xff]
        %v265 = vld [vmem:[#allocation2 + $0x168] sm:$0xff]
        %v266 = vld [vmem:[#allocation2 + $0x170] sm:$0xff]
        %v267 = vld [vmem:[#allocation2 + $0x178] sm:$0xff]
        %v268 = vld [vmem:[#allocation2 + $0x180] sm:$0xff]
        %v269 = vld [vmem:[#allocation2 + $0x188] sm:$0xff]
        %v270 = vld [vmem:[#allocation2 + $0x190] sm:$0xff]
        %v271 = vld [vmem:[#allocation2 + $0x198] sm:$0xff]
        %v272 = vld [vmem:[#allocation2 + $0x1a0] sm:$0xff]
        %v273 = vld [vmem:[#allocation2 + $0x1a8] sm:$0xff]
        %v274 = vld [vmem:[#allocation2 + $0x1b0] sm:$0xff]
        %v275 = vld [vmem:[#allocation2 + $0x1b8] sm:$0xff]
        %v276 = vld [vmem:[#allocation2 + $0x1c0] sm:$0x11]
        %v277 = vld [vmem:[%s206] sm:$0xf]
        %v278 = vld [vmem:[%s206 + $0x4] sm:$0xf]
        %v279 = vld [vmem:[%s206 + $0x8] sm:$0xf]
        %v280 = vld [vmem:[%s206 + $0xc] sm:$0xf]
        %v281 = vld [vmem:[%s206 + $0x10] sm:$0xf]
        %v282 = vld [vmem:[%s206 + $0x14] sm:$0xf]
        %v283 = vld [vmem:[%s206 + $0x18] sm:$0xf]
        %v284 = vld [vmem:[%s206 + $0x1c] sm:$0xf]
        %v285 = vld [vmem:[%s206 + $0x20] sm:$0xf]
        %v286 = vld [vmem:[%s206 + $0x24] sm:$0xf]
        %v287 = vld [vmem:[%s206 + $0x28] sm:$0xf]
        %v288 = vld [vmem:[%s206 + $0x2c] sm:$0xf]
        %v289 = vld [vmem:[%s206 + $0x30] sm:$0xf]
        %v290 = vld [vmem:[%s206 + $0x34] sm:$0xf]
        %v291 = vld [vmem:[%s206 + $0x38] sm:$0xf]
        %v292 = vld [vmem:[%s206 + $0x3c] sm:$0xf]
        %v293 = vld [vmem:[%s206 + $0x40] sm:$0xf]
        %v294 = vld [vmem:[%s206 + $0x44] sm:$0xf]
        %v295 = vld [vmem:[%s206 + $0x48] sm:$0xf]
        %v296 = vld [vmem:[%s206 + $0x4c] sm:$0xf]
        %v297 = vld [vmem:[%s206 + $0x50] sm:$0xf]
        %v298 = vld [vmem:[%s206 + $0x54] sm:$0xf]
        %v299 = vld [vmem:[%s206 + $0x58] sm:$0xf]
        %v300 = vld [vmem:[%s206 + $0x5c] sm:$0xf]
        %v301 = vld [vmem:[%s206 + $0x60] sm:$0xf]
        %v302 = vld [vmem:[%s206 + $0x64] sm:$0xf]
        %v303 = vld [vmem:[%s206 + $0x68] sm:$0xf]
        %v304 = vld [vmem:[%s206 + $0x6c] sm:$0xf]
        %v305 = vld [vmem:[%s206 + $0x70] sm:$0xf]
        %v306 = vld [vmem:[%s206 + $0x74] sm:$0xf]
        %v307 = vld [vmem:[%s206 + $0x78] sm:$0xf]
        %v308 = vld [vmem:[%s206 + $0x7c] sm:$0xf]
        %v366 = vunpack.c.l.b16 %v220
        %v367 = vunpack.c.h.b16 %v220
        %v368 = vunpack.c.l.b16 %v221
        %v369 = vunpack.c.h.b16 %v221
        %v370 = vunpack.c.l.b16 %v222
        %v371 = vunpack.c.h.b16 %v222
        %v372 = vunpack.c.l.b16 %v223
        %v373 = vunpack.c.h.b16 %v223
        %v374 = vunpack.c.l.b16 %v224
        %v375 = vunpack.c.h.b16 %v224
        %v376 = vunpack.c.l.b16 %v225
        %v377 = vunpack.c.h.b16 %v225
        %v378 = vunpack.c.l.b16 %v226
        %v379 = vunpack.c.h.b16 %v226
        %v380 = vunpack.c.l.b16 %v227
        %v381 = vunpack.c.h.b16 %v227
        %v382 = vunpack.c.l.b16 %v228
        %v383 = vunpack.c.h.b16 %v228
        %v384 = vunpack.c.l.b16 %v229
        %v385 = vunpack.c.h.b16 %v229
        %v386 = vunpack.c.l.b16 %v230
        %v387 = vunpack.c.h.b16 %v230
        %v388 = vunpack.c.l.b16 %v231
        %v389 = vunpack.c.h.b16 %v231
        %v390 = vunpack.c.l.b16 %v232
        %v391 = vunpack.c.h.b16 %v232
        %v392 = vunpack.c.l.b16 %v233
        %v393 = vunpack.c.h.b16 %v233
        %v394 = vunpack.c.l.b16 %v234
        %v395 = vunpack.c.h.b16 %v234
        %v396 = vunpack.c.l.b16 %v235
        %v397 = vunpack.c.h.b16 %v235
        %v398 = vunpack.c.l.b16 %v236
        %v399 = vunpack.c.h.b16 %v236
        %v400 = vunpack.c.l.b16 %v237
        %v401 = vunpack.c.h.b16 %v237
        %v402 = vunpack.c.l.b16 %v238
        %v403 = vunpack.c.h.b16 %v238
        %v404 = vunpack.c.l.b16 %v239
        %v405 = vunpack.c.h.b16 %v239
        %v406 = vunpack.c.l.b16 %v240
        %v407 = vunpack.c.h.b16 %v240
        %v408 = vunpack.c.l.b16 %v241
        %v409 = vunpack.c.h.b16 %v241
        %v410 = vunpack.c.l.b16 %v242
        %v411 = vunpack.c.h.b16 %v242
        %v412 = vunpack.c.l.b16 %v243
        %v413 = vunpack.c.h.b16 %v243
        %v414 = vunpack.c.l.b16 %v244
        %v415 = vunpack.c.h.b16 %v244
        %v416 = vunpack.c.l.b16 %v245
        %v417 = vunpack.c.h.b16 %v245
        %v418 = vunpack.c.l.b16 %v246
        %v419 = vunpack.c.h.b16 %v246
        %v420 = vunpack.c.l.b16 %v247
        %v421 = vunpack.c.h.b16 %v247
        %v422 = vunpack.c.l.b16 %v248
        %v423 = vunpack.c.h.b16 %v248
        %v424 = vunpack.c.l.b16 %v249
        %v425 = vunpack.c.h.b16 %v249
        %v426 = vunpack.c.l.b16 %v250
        %v427 = vunpack.c.h.b16 %v250
        %v428 = vunpack.c.l.b16 %v251
        %v429 = vunpack.c.h.b16 %v251
        %v430 = vunpack.c.l.b16 %v252
        %v431 = vunpack.c.h.b16 %v252
        %v432 = vunpack.c.l.b16 %v253
        %v433 = vunpack.c.h.b16 %v253
        %v434 = vunpack.c.l.b16 %v254
        %v435 = vunpack.c.h.b16 %v254
        %v436 = vunpack.c.l.b16 %v255
        %v437 = vunpack.c.h.b16 %v255
        %v438 = vunpack.c.l.b16 %v256
        %v439 = vunpack.c.h.b16 %v256
        %v440 = vunpack.c.l.b16 %v257
        %v441 = vunpack.c.h.b16 %v257
        %v442 = vunpack.c.l.b16 %v258
        %v443 = vunpack.c.h.b16 %v258
        %v444 = vunpack.c.l.b16 %v259
        %v445 = vunpack.c.h.b16 %v259
        %v446 = vunpack.c.l.b16 %v260
        %v447 = vunpack.c.h.b16 %v260
        %v448 = vunpack.c.l.b16 %v261
        %v449 = vunpack.c.h.b16 %v261
        %v450 = vunpack.c.l.b16 %v262
        %v451 = vunpack.c.h.b16 %v262
        %v452 = vunpack.c.l.b16 %v263
        %v453 = vunpack.c.h.b16 %v263
        %v454 = vunpack.c.l.b16 %v264
        %v455 = vunpack.c.h.b16 %v264
        %v456 = vunpack.c.l.b16 %v265
        %v457 = vunpack.c.h.b16 %v265
        %v458 = vunpack.c.l.b16 %v266
        %v459 = vunpack.c.h.b16 %v266
        %v460 = vunpack.c.l.b16 %v267
        %v461 = vunpack.c.h.b16 %v267
        %v462 = vunpack.c.l.b16 %v268
        %v463 = vunpack.c.h.b16 %v268
        %v464 = vunpack.c.l.b16 %v269
        %v465 = vunpack.c.h.b16 %v269
        %v466 = vunpack.c.l.b16 %v270
        %v467 = vunpack.c.h.b16 %v270
        %v468 = vunpack.c.l.b16 %v271
        %v469 = vunpack.c.h.b16 %v271
        %v470 = vunpack.c.l.b16 %v272
        %v471 = vunpack.c.h.b16 %v272
        %v472 = vunpack.c.l.b16 %v273
        %v473 = vunpack.c.h.b16 %v273
        %v474 = vunpack.c.l.b16 %v274
        %v475 = vunpack.c.h.b16 %v274
        %v476 = vunpack.c.l.b16 %v275
        %v477 = vunpack.c.h.b16 %v275
        %v478 = vunpack.c.l.b16 %v276
        %v479 = vunpack.c.h.b16 %v276
        %v480 = vpack.c.b16 %v368, %v366
        %v481 = vpack.c.b16 %v369, %v367
        %v482 = vpack.c.b16 %v372, %v370
        %v483 = vpack.c.b16 %v373, %v371
        %v484 = vpack.c.b16 %v376, %v374
        %v485 = vpack.c.b16 %v377, %v375
        %v486 = vpack.c.b16 %v380, %v378
        %v487 = vpack.c.b16 %v381, %v379
        %v488 = vpack.c.b16 %v384, %v382
        %v489 = vpack.c.b16 %v385, %v383
        %v490 = vpack.c.b16 %v388, %v386
        %v491 = vpack.c.b16 %v389, %v387
        %v492 = vpack.c.b16 %v392, %v390
        %v493 = vpack.c.b16 %v393, %v391
        %v494 = vpack.c.b16 %v396, %v394
        %v495 = vpack.c.b16 %v397, %v395
        %v496 = vpack.c.b16 %v400, %v398
        %v497 = vpack.c.b16 %v401, %v399
        %v498 = vpack.c.b16 %v404, %v402
        %v499 = vpack.c.b16 %v405, %v403
        %v500 = vpack.c.b16 %v408, %v406
        %v501 = vpack.c.b16 %v409, %v407
        %v502 = vpack.c.b16 %v412, %v410
        %v503 = vpack.c.b16 %v413, %v411
        %v504 = vpack.c.b16 %v416, %v414
        %v505 = vpack.c.b16 %v417, %v415
        %v506 = vpack.c.b16 %v420, %v418
        %v507 = vpack.c.b16 %v421, %v419
        %v508 = vpack.c.b16 %v424, %v422
        %v509 = vpack.c.b16 %v425, %v423
        %v510 = vpack.c.b16 %v428, %v426
        %v511 = vpack.c.b16 %v429, %v427
        %v512 = vpack.c.b16 %v432, %v430
        %v513 = vpack.c.b16 %v433, %v431
        %v514 = vpack.c.b16 %v436, %v434
        %v515 = vpack.c.b16 %v437, %v435
        %v516 = vpack.c.b16 %v440, %v438
        %v517 = vpack.c.b16 %v441, %v439
        %v518 = vpack.c.b16 %v444, %v442
        %v519 = vpack.c.b16 %v445, %v443
        %v520 = vpack.c.b16 %v448, %v446
        %v521 = vpack.c.b16 %v449, %v447
        %v522 = vpack.c.b16 %v452, %v450
        %v523 = vpack.c.b16 %v453, %v451
        %v524 = vpack.c.b16 %v456, %v454
        %v525 = vpack.c.b16 %v457, %v455
        %v526 = vpack.c.b16 %v460, %v458
        %v527 = vpack.c.b16 %v461, %v459
        %v528 = vpack.c.b16 %v464, %v462
        %v529 = vpack.c.b16 %v465, %v463
        %v530 = vpack.c.b16 %v468, %v466
        %v531 = vpack.c.b16 %v469, %v467
        %v532 = vpack.c.b16 %v472, %v470
        %v533 = vpack.c.b16 %v473, %v471
        %v534 = vpack.c.b16 %v476, %v474
        %v535 = vpack.c.b16 %v477, %v475
        %v536 = vpack.c.b16 %v478, %v478
        %v537 = vpack.c.b16 %v479, %v479
        %v628 = vunpack.c.l.b16 %v277
        %v629 = vunpack.c.l.b16 %v278
        %v630 = vunpack.c.l.b16 %v279
        %v631 = vunpack.c.l.b16 %v280
        %v632 = vunpack.c.l.b16 %v281
        %v633 = vunpack.c.l.b16 %v282
        %v634 = vunpack.c.l.b16 %v283
        %v635 = vunpack.c.l.b16 %v284
        %v636 = vunpack.c.l.b16 %v285
        %v637 = vunpack.c.l.b16 %v286
        %v638 = vunpack.c.l.b16 %v287
        %v639 = vunpack.c.l.b16 %v288
        %v640 = vunpack.c.l.b16 %v289
        %v641 = vunpack.c.l.b16 %v290
        %v642 = vunpack.c.l.b16 %v291
        %v643 = vunpack.c.l.b16 %v292
        %v644 = vunpack.c.l.b16 %v293
        %v645 = vunpack.c.l.b16 %v294
        %v646 = vunpack.c.l.b16 %v295
        %v647 = vunpack.c.l.b16 %v296
        %v648 = vunpack.c.l.b16 %v297
        %v649 = vunpack.c.l.b16 %v298
        %v650 = vunpack.c.l.b16 %v299
        %v651 = vunpack.c.l.b16 %v300
        %v652 = vunpack.c.l.b16 %v301
        %v653 = vunpack.c.l.b16 %v302
        %v654 = vunpack.c.l.b16 %v303
        %v655 = vunpack.c.l.b16 %v304
        %v656 = vunpack.c.l.b16 %v305
        %v657 = vunpack.c.l.b16 %v306
        %v658 = vunpack.c.l.b16 %v307
        %v659 = vunpack.c.l.b16 %v308
        %v660 = vpack.c.b16 %v629, %v628
        %v661 = vpack.c.b16 %v631, %v630
        %v662 = vpack.c.b16 %v633, %v632
        %v663 = vpack.c.b16 %v635, %v634
        %v664 = vpack.c.b16 %v637, %v636
        %v665 = vpack.c.b16 %v639, %v638
        %v666 = vpack.c.b16 %v641, %v640
        %v667 = vpack.c.b16 %v643, %v642
        %v668 = vpack.c.b16 %v645, %v644
        %v669 = vpack.c.b16 %v647, %v646
        %v670 = vpack.c.b16 %v649, %v648
        %v671 = vpack.c.b16 %v651, %v650
        %v672 = vpack.c.b16 %v653, %v652
        %v673 = vpack.c.b16 %v655, %v654
        %v674 = vpack.c.b16 %v657, %v656
        %v675 = vpack.c.b16 %v659, %v658
        %692 = vmatpush.bf16.msra.mxu0 %v667
        %693 = vmatpush.bf16.msra.mxu0 %v666
        %694 = vmatpush.bf16.msra.mxu0 %v665
        %695 = vmatpush.bf16.msra.mxu0 %v664
        %696 = vmatpush.bf16.msra.mxu0 %v663
        %697 = vmatpush.bf16.msra.mxu0 %v662
        %698 = vmatpush.bf16.msra.mxu0 %v661
        %699 = vmatpush.bf16.msra.mxu0 %v660
        %700 = vmatmul.bf16.gmra.mxu0 %v480
        %v701 = vpop.f32.mrf.mxu0
        %v702 = vadd.f32 0.0, %v701
        %v703 = vpop.f32.mrf.mxu0
        %v704 = vadd.f32 0.0, %v703
        %705 = vmatmul.bf16.gmra.mxu0 %v482
        %v706 = vpop.f32.mrf.mxu0
        %v707 = vadd.f32 0.0, %v706
        %v708 = vpop.f32.mrf.mxu0
        %v709 = vadd.f32 0.0, %v708
        %710 = vmatmul.bf16.gmra.mxu0 %v484
        %v711 = vpop.f32.mrf.mxu0
        %v712 = vadd.f32 0.0, %v711
        %v713 = vpop.f32.mrf.mxu0
        %v714 = vadd.f32 0.0, %v713
        %715 = vmatmul.bf16.gmra.mxu0 %v486
        %v716 = vpop.f32.mrf.mxu0
        %v717 = vadd.f32 0.0, %v716
        %v718 = vpop.f32.mrf.mxu0
        %v719 = vadd.f32 0.0, %v718
        %720 = vmatmul.bf16.gmra.mxu0 %v488
        %v721 = vpop.f32.mrf.mxu0
        %v722 = vadd.f32 0.0, %v721
        %v723 = vpop.f32.mrf.mxu0
        %v724 = vadd.f32 0.0, %v723
        %725 = vmatmul.bf16.gmra.mxu0 %v490
        %v726 = vpop.f32.mrf.mxu0
        %v727 = vadd.f32 0.0, %v726
        %v728 = vpop.f32.mrf.mxu0
        %v729 = vadd.f32 0.0, %v728
        %730 = vmatmul.bf16.gmra.mxu0 %v492
        %v731 = vpop.f32.mrf.mxu0
        %v732 = vadd.f32 0.0, %v731
        %v733 = vpop.f32.mrf.mxu0
        %v734 = vadd.f32 0.0, %v733
        %735 = vmatmul.bf16.gmra.mxu0 %v494
        %v736 = vpop.f32.mrf.mxu0
        %v737 = vadd.f32 0.0, %v736
        %v738 = vpop.f32.mrf.mxu0
        %v739 = vadd.f32 0.0, %v738
        %740 = vmatmul.bf16.gmra.mxu0 %v496
        %v741 = vpop.f32.mrf.mxu0
        %v742 = vadd.f32 0.0, %v741
        %v743 = vpop.f32.mrf.mxu0
        %v744 = vadd.f32 0.0, %v743
        %745 = vmatmul.bf16.gmra.mxu0 %v498
        %v746 = vpop.f32.mrf.mxu0
        %v747 = vadd.f32 0.0, %v746
        %v748 = vpop.f32.mrf.mxu0
        %v749 = vadd.f32 0.0, %v748
        %750 = vmatmul.bf16.gmra.mxu0 %v500
        %v751 = vpop.f32.mrf.mxu0
        %v752 = vadd.f32 0.0, %v751
        %v753 = vpop.f32.mrf.mxu0
        %v754 = vadd.f32 0.0, %v753
        %755 = vmatmul.bf16.gmra.mxu0 %v502
        %v756 = vpop.f32.mrf.mxu0
        %v757 = vadd.f32 0.0, %v756
        %v758 = vpop.f32.mrf.mxu0
        %v759 = vadd.f32 0.0, %v758
        %760 = vmatmul.bf16.gmra.mxu0 %v504
        %v761 = vpop.f32.mrf.mxu0
        %v762 = vadd.f32 0.0, %v761
        %v763 = vpop.f32.mrf.mxu0
        %v764 = vadd.f32 0.0, %v763
        %765 = vmatmul.bf16.gmra.mxu0 %v506
        %v766 = vpop.f32.mrf.mxu0
        %v767 = vadd.f32 0.0, %v766
        %v768 = vpop.f32.mrf.mxu0
        %v769 = vadd.f32 0.0, %v768
        %770 = vmatmul.bf16.gmra.mxu0 %v508
        %v771 = vpop.f32.mrf.mxu0
        %v772 = vadd.f32 0.0, %v771
        %v773 = vpop.f32.mrf.mxu0
        %v774 = vadd.f32 0.0, %v773
        %775 = vmatmul.bf16.gmra.mxu0 %v510
        %v776 = vpop.f32.mrf.mxu0
        %v777 = vadd.f32 0.0, %v776
        %v778 = vpop.f32.mrf.mxu0
        %v779 = vadd.f32 0.0, %v778
        %780 = vmatmul.bf16.gmra.mxu0 %v512
        %v781 = vpop.f32.mrf.mxu0
        %v782 = vadd.f32 0.0, %v781
        %v783 = vpop.f32.mrf.mxu0
        %v784 = vadd.f32 0.0, %v783
        %785 = vmatmul.bf16.gmra.mxu0 %v514
        %v786 = vpop.f32.mrf.mxu0
        %v787 = vadd.f32 0.0, %v786
        %v788 = vpop.f32.mrf.mxu0
        %v789 = vadd.f32 0.0, %v788
        %790 = vmatmul.bf16.gmra.mxu0 %v516
        %v791 = vpop.f32.mrf.mxu0
        %v792 = vadd.f32 0.0, %v791
        %v793 = vpop.f32.mrf.mxu0
        %v794 = vadd.f32 0.0, %v793
        %795 = vmatmul.bf16.gmra.mxu0 %v518
        %v796 = vpop.f32.mrf.mxu0
        %v797 = vadd.f32 0.0, %v796
        %v798 = vpop.f32.mrf.mxu0
        %v799 = vadd.f32 0.0, %v798
        %800 = vmatmul.bf16.gmra.mxu0 %v520
        %v801 = vpop.f32.mrf.mxu0
        %v802 = vadd.f32 0.0, %v801
        %v803 = vpop.f32.mrf.mxu0
        %v804 = vadd.f32 0.0, %v803
        %805 = vmatmul.bf16.gmra.mxu0 %v522
        %v806 = vpop.f32.mrf.mxu0
        %v807 = vadd.f32 0.0, %v806
        %v808 = vpop.f32.mrf.mxu0
        %v809 = vadd.f32 0.0, %v808
        %810 = vmatmul.bf16.gmra.mxu0 %v524
        %v811 = vpop.f32.mrf.mxu0
        %v812 = vadd.f32 0.0, %v811
        %v813 = vpop.f32.mrf.mxu0
        %v814 = vadd.f32 0.0, %v813
        %815 = vmatmul.bf16.gmra.mxu0 %v526
        %v816 = vpop.f32.mrf.mxu0
        %v817 = vadd.f32 0.0, %v816
        %v818 = vpop.f32.mrf.mxu0
        %v819 = vadd.f32 0.0, %v818
        %820 = vmatmul.bf16.gmra.mxu0 %v528
        %v821 = vpop.f32.mrf.mxu0
        %v822 = vadd.f32 0.0, %v821
        %v823 = vpop.f32.mrf.mxu0
        %v824 = vadd.f32 0.0, %v823
        %825 = vmatmul.bf16.gmra.mxu0 %v530
        %v826 = vpop.f32.mrf.mxu0
        %v827 = vadd.f32 0.0, %v826
        %v828 = vpop.f32.mrf.mxu0
        %v829 = vadd.f32 0.0, %v828
        %830 = vmatmul.bf16.gmra.mxu0 %v532
        %v831 = vpop.f32.mrf.mxu0
        %v832 = vadd.f32 0.0, %v831
        %v833 = vpop.f32.mrf.mxu0
        %v834 = vadd.f32 0.0, %v833
        %835 = vmatmul.bf16.gmra.mxu0 %v534
        %v836 = vpop.f32.mrf.mxu0
        %v837 = vadd.f32 0.0, %v836
        %v838 = vpop.f32.mrf.mxu0
        %v839 = vadd.f32 0.0, %v838
        %840 = vmatmul.bf16.gmra.mxu0 %v536
        %v841 = vpop.f32.mrf.mxu0
        %v842 = vadd.f32 0.0, %v841
        %v843 = vpop.f32.mrf.mxu0
        %844 = vdwg.mxu0
        %845 = vmatpush.bf16.msra.mxu0 %v675
        %846 = vmatpush.bf16.msra.mxu0 %v674
        %847 = vmatpush.bf16.msra.mxu0 %v673
        %848 = vmatpush.bf16.msra.mxu0 %v672
        %849 = vmatpush.bf16.msra.mxu0 %v671
        %850 = vmatpush.bf16.msra.mxu0 %v670
        %851 = vmatpush.bf16.msra.mxu0 %v669
        %852 = vmatpush.bf16.msra.mxu0 %v668
        %853 = vmatmul.bf16.gmra.mxu0 %v481
        %v854 = vpop.f32.mrf.mxu0
        %v855 = vadd.f32 %v702, %v854
        %v856 = vpop.f32.mrf.mxu0
        %v857 = vadd.f32 %v704, %v856
        %858 = vmatmul.bf16.gmra.mxu0 %v483
        %v859 = vpop.f32.mrf.mxu0
        %v860 = vadd.f32 %v707, %v859
        %v861 = vpop.f32.mrf.mxu0
        %v862 = vadd.f32 %v709, %v861
        %863 = vmatmul.bf16.gmra.mxu0 %v485
        %v864 = vpop.f32.mrf.mxu0
        %v865 = vadd.f32 %v712, %v864
        %v866 = vpop.f32.mrf.mxu0
        %v867 = vadd.f32 %v714, %v866
        %868 = vmatmul.bf16.gmra.mxu0 %v487
        %v869 = vpop.f32.mrf.mxu0
        %v870 = vadd.f32 %v717, %v869
        %v871 = vpop.f32.mrf.mxu0
        %v872 = vadd.f32 %v719, %v871
        %873 = vmatmul.bf16.gmra.mxu0 %v489
        %v874 = vpop.f32.mrf.mxu0
        %v875 = vadd.f32 %v722, %v874
        %v876 = vpop.f32.mrf.mxu0
        %v877 = vadd.f32 %v724, %v876
        %878 = vmatmul.bf16.gmra.mxu0 %v491
        %v879 = vpop.f32.mrf.mxu0
        %v880 = vadd.f32 %v727, %v879
        %v881 = vpop.f32.mrf.mxu0
        %v882 = vadd.f32 %v729, %v881
        %883 = vmatmul.bf16.gmra.mxu0 %v493
        %v884 = vpop.f32.mrf.mxu0
        %v885 = vadd.f32 %v732, %v884
        %v886 = vpop.f32.mrf.mxu0
        %v887 = vadd.f32 %v734, %v886
        %888 = vmatmul.bf16.gmra.mxu0 %v495
        %v889 = vpop.f32.mrf.mxu0
        %v890 = vadd.f32 %v737, %v889
        %v891 = vpop.f32.mrf.mxu0
        %v892 = vadd.f32 %v739, %v891
        %893 = vmatmul.bf16.gmra.mxu0 %v497
        %v894 = vpop.f32.mrf.mxu0
        %v895 = vadd.f32 %v742, %v894
        %v896 = vpop.f32.mrf.mxu0
        %v897 = vadd.f32 %v744, %v896
        %898 = vmatmul.bf16.gmra.mxu0 %v499
        %v899 = vpop.f32.mrf.mxu0
        %v900 = vadd.f32 %v747, %v899
        %v901 = vpop.f32.mrf.mxu0
        %v902 = vadd.f32 %v749, %v901
        %903 = vmatmul.bf16.gmra.mxu0 %v501
        %v904 = vpop.f32.mrf.mxu0
        %v905 = vadd.f32 %v752, %v904
        %v906 = vpop.f32.mrf.mxu0
        %v907 = vadd.f32 %v754, %v906
        %908 = vmatmul.bf16.gmra.mxu0 %v503
        %v909 = vpop.f32.mrf.mxu0
        %v910 = vadd.f32 %v757, %v909
        %v911 = vpop.f32.mrf.mxu0
        %v912 = vadd.f32 %v759, %v911
        %913 = vmatmul.bf16.gmra.mxu0 %v505
        %v914 = vpop.f32.mrf.mxu0
        %v915 = vadd.f32 %v762, %v914
        %v916 = vpop.f32.mrf.mxu0
        %v917 = vadd.f32 %v764, %v916
        %918 = vmatmul.bf16.gmra.mxu0 %v507
        %v919 = vpop.f32.mrf.mxu0
        %v920 = vadd.f32 %v767, %v919
        %v921 = vpop.f32.mrf.mxu0
        %v922 = vadd.f32 %v769, %v921
        %923 = vmatmul.bf16.gmra.mxu0 %v509
        %v924 = vpop.f32.mrf.mxu0
        %v925 = vadd.f32 %v772, %v924
        %v926 = vpop.f32.mrf.mxu0
        %v927 = vadd.f32 %v774, %v926
        %928 = vmatmul.bf16.gmra.mxu0 %v511
        %v929 = vpop.f32.mrf.mxu0
        %v930 = vadd.f32 %v777, %v929
        %v931 = vpop.f32.mrf.mxu0
        %v932 = vadd.f32 %v779, %v931
        %933 = vmatmul.bf16.gmra.mxu0 %v513
        %v934 = vpop.f32.mrf.mxu0
        %v935 = vadd.f32 %v782, %v934
        %v936 = vpop.f32.mrf.mxu0
        %v937 = vadd.f32 %v784, %v936
        %938 = vmatmul.bf16.gmra.mxu0 %v515
        %v939 = vpop.f32.mrf.mxu0
        %v940 = vadd.f32 %v787, %v939
        %v941 = vpop.f32.mrf.mxu0
        %v942 = vadd.f32 %v789, %v941
        %943 = vmatmul.bf16.gmra.mxu0 %v517
        %v944 = vpop.f32.mrf.mxu0
        %v945 = vadd.f32 %v792, %v944
        %v946 = vpop.f32.mrf.mxu0
        %v947 = vadd.f32 %v794, %v946
        %948 = vmatmul.bf16.gmra.mxu0 %v519
        %v949 = vpop.f32.mrf.mxu0
        %v950 = vadd.f32 %v797, %v949
        %v951 = vpop.f32.mrf.mxu0
        %v952 = vadd.f32 %v799, %v951
        %953 = vmatmul.bf16.gmra.mxu0 %v521
        %v954 = vpop.f32.mrf.mxu0
        %v955 = vadd.f32 %v802, %v954
        %v956 = vpop.f32.mrf.mxu0
        %v957 = vadd.f32 %v804, %v956
        %958 = vmatmul.bf16.gmra.mxu0 %v523
        %v959 = vpop.f32.mrf.mxu0
        %v960 = vadd.f32 %v807, %v959
        %v961 = vpop.f32.mrf.mxu0
        %v962 = vadd.f32 %v809, %v961
        %963 = vmatmul.bf16.gmra.mxu0 %v525
        %v964 = vpop.f32.mrf.mxu0
        %v965 = vadd.f32 %v812, %v964
        %v966 = vpop.f32.mrf.mxu0
        %v967 = vadd.f32 %v814, %v966
        %968 = vmatmul.bf16.gmra.mxu0 %v527
        %v969 = vpop.f32.mrf.mxu0
        %v970 = vadd.f32 %v817, %v969
        %v971 = vpop.f32.mrf.mxu0
        %v972 = vadd.f32 %v819, %v971
        %973 = vmatmul.bf16.gmra.mxu0 %v529
        %v974 = vpop.f32.mrf.mxu0
        %v975 = vadd.f32 %v822, %v974
        %v976 = vpop.f32.mrf.mxu0
        %v977 = vadd.f32 %v824, %v976
        %978 = vmatmul.bf16.gmra.mxu0 %v531
        %v979 = vpop.f32.mrf.mxu0
        %v980 = vadd.f32 %v827, %v979
        %v981 = vpop.f32.mrf.mxu0
        %v982 = vadd.f32 %v829, %v981
        %983 = vmatmul.bf16.gmra.mxu0 %v533
        %v984 = vpop.f32.mrf.mxu0
        %v985 = vadd.f32 %v832, %v984
        %v986 = vpop.f32.mrf.mxu0
        %v987 = vadd.f32 %v834, %v986
        %988 = vmatmul.bf16.gmra.mxu0 %v535
        %v989 = vpop.f32.mrf.mxu0
        %v990 = vadd.f32 %v837, %v989
        %v991 = vpop.f32.mrf.mxu0
        %v992 = vadd.f32 %v839, %v991
        %993 = vmatmul.bf16.gmra.mxu0 %v537
        %v994 = vpop.f32.mrf.mxu0
        %v995 = vadd.f32 %v842, %v994
        %v996 = vpop.f32.mrf.mxu0
        %997 = vdwg.mxu0
        %v998 = vpack.c.bf16 %v855, %v855
        %v999 = vpack.c.bf16 %v857, %v857
        %v1000 = vpack.c.bf16 %v860, %v860
        %v1001 = vpack.c.bf16 %v862, %v862
        %v1002 = vpack.c.bf16 %v865, %v865
        %v1003 = vpack.c.bf16 %v867, %v867
        %v1004 = vpack.c.bf16 %v870, %v870
        %v1005 = vpack.c.bf16 %v872, %v872
        %v1006 = vpack.c.bf16 %v875, %v875
        %v1007 = vpack.c.bf16 %v877, %v877
        %v1008 = vpack.c.bf16 %v880, %v880
        %v1009 = vpack.c.bf16 %v882, %v882
        %v1010 = vpack.c.bf16 %v885, %v885
        %v1011 = vpack.c.bf16 %v887, %v887
        %v1012 = vpack.c.bf16 %v890, %v890
        %v1013 = vpack.c.bf16 %v892, %v892
        %v1014 = vpack.c.bf16 %v895, %v895
        %v1015 = vpack.c.bf16 %v897, %v897
        %v1016 = vpack.c.bf16 %v900, %v900
        %v1017 = vpack.c.bf16 %v902, %v902
        %v1018 = vpack.c.bf16 %v905, %v905
        %v1019 = vpack.c.bf16 %v907, %v907
        %v1020 = vpack.c.bf16 %v910, %v910
        %v1021 = vpack.c.bf16 %v912, %v912
        %v1022 = vpack.c.bf16 %v915, %v915
        %v1023 = vpack.c.bf16 %v917, %v917
        %v1024 = vpack.c.bf16 %v920, %v920
        %v1025 = vpack.c.bf16 %v922, %v922
        %v1026 = vpack.c.bf16 %v925, %v925
        %v1027 = vpack.c.bf16 %v927, %v927
        %v1028 = vpack.c.bf16 %v930, %v930
        %v1029 = vpack.c.bf16 %v932, %v932
        %v1030 = vpack.c.bf16 %v935, %v935
        %v1031 = vpack.c.bf16 %v937, %v937
        %v1032 = vpack.c.bf16 %v940, %v940
        %v1033 = vpack.c.bf16 %v942, %v942
        %v1034 = vpack.c.bf16 %v945, %v945
        %v1035 = vpack.c.bf16 %v947, %v947
        %v1036 = vpack.c.bf16 %v950, %v950
        %v1037 = vpack.c.bf16 %v952, %v952
        %v1038 = vpack.c.bf16 %v955, %v955
        %v1039 = vpack.c.bf16 %v957, %v957
        %v1040 = vpack.c.bf16 %v960, %v960
        %v1041 = vpack.c.bf16 %v962, %v962
        %v1042 = vpack.c.bf16 %v965, %v965
        %v1043 = vpack.c.bf16 %v967, %v967
        %v1044 = vpack.c.bf16 %v970, %v970
        %v1045 = vpack.c.bf16 %v972, %v972
        %v1046 = vpack.c.bf16 %v975, %v975
        %v1047 = vpack.c.bf16 %v977, %v977
        %v1048 = vpack.c.bf16 %v980, %v980
        %v1049 = vpack.c.bf16 %v982, %v982
        %v1050 = vpack.c.bf16 %v985, %v985
        %v1051 = vpack.c.bf16 %v987, %v987
        %v1052 = vpack.c.bf16 %v990, %v990
        %v1053 = vpack.c.bf16 %v992, %v992
        %v1054 = vpack.c.bf16 %v995, %v995
        %vm1055 = vcmask 60416
        %1056 = vst.msk [vmem:[%s218] sm:$0xf] %vm1055, %v998
        %1057 = vst.msk [vmem:[%s218 + $0x4] sm:$0xf] %vm1055, %v999
        %1058 = vst.msk [vmem:[%s218 + $0x8] sm:$0xf] %vm1055, %v1000
        %1059 = vst.msk [vmem:[%s218 + $0xc] sm:$0xf] %vm1055, %v1001
        %1060 = vst.msk [vmem:[%s218 + $0x10] sm:$0xf] %vm1055, %v1002
        %1061 = vst.msk [vmem:[%s218 + $0x14] sm:$0xf] %vm1055, %v1003
        %1062 = vst.msk [vmem:[%s218 + $0x18] sm:$0xf] %vm1055, %v1004
        %1063 = vst.msk [vmem:[%s218 + $0x1c] sm:$0xf] %vm1055, %v1005
        %1064 = vst.msk [vmem:[%s218 + $0x20] sm:$0xf] %vm1055, %v1006
        %1065 = vst.msk [vmem:[%s218 + $0x24] sm:$0xf] %vm1055, %v1007
        %1066 = vst.msk [vmem:[%s218 + $0x28] sm:$0xf] %vm1055, %v1008
        %1067 = vst.msk [vmem:[%s218 + $0x2c] sm:$0xf] %vm1055, %v1009
        %1068 = vst.msk [vmem:[%s218 + $0x30] sm:$0xf] %vm1055, %v1010
        %1069 = vst.msk [vmem:[%s218 + $0x34] sm:$0xf] %vm1055, %v1011
        %1070 = vst.msk [vmem:[%s218 + $0x38] sm:$0xf] %vm1055, %v1012
        %1071 = vst.msk [vmem:[%s218 + $0x3c] sm:$0xf] %vm1055, %v1013
        %1072 = vst.msk [vmem:[%s218 + $0x40] sm:$0xf] %vm1055, %v1014
        %1073 = vst.msk [vmem:[%s218 + $0x44] sm:$0xf] %vm1055, %v1015
        %1074 = vst.msk [vmem:[%s218 + $0x48] sm:$0xf] %vm1055, %v1016
        %1075 = vst.msk [vmem:[%s218 + $0x4c] sm:$0xf] %vm1055, %v1017
        %1076 = vst.msk [vmem:[%s218 + $0x50] sm:$0xf] %vm1055, %v1018
        %1077 = vst.msk [vmem:[%s218 + $0x54] sm:$0xf] %vm1055, %v1019
        %1078 = vst.msk [vmem:[%s218 + $0x58] sm:$0xf] %vm1055, %v1020
        %1079 = vst.msk [vmem:[%s218 + $0x5c] sm:$0xf] %vm1055, %v1021
        %1080 = vst.msk [vmem:[%s218 + $0x60] sm:$0xf] %vm1055, %v1022
        %1081 = vst.msk [vmem:[%s218 + $0x64] sm:$0xf] %vm1055, %v1023
        %1082 = vst.msk [vmem:[%s218 + $0x68] sm:$0xf] %vm1055, %v1024
        %1083 = vst.msk [vmem:[%s218 + $0x6c] sm:$0xf] %vm1055, %v1025
        %1084 = vst.msk [vmem:[%s218 + $0x70] sm:$0xf] %vm1055, %v1026
        %1085 = vst.msk [vmem:[%s218 + $0x74] sm:$0xf] %vm1055, %v1027
        %1086 = vst.msk [vmem:[%s218 + $0x78] sm:$0xf] %vm1055, %v1028
        %1087 = vst.msk [vmem:[%s218 + $0x7c] sm:$0xf] %vm1055, %v1029
        %1088 = vst.msk [vmem:[%s218 + $0x80] sm:$0xf] %vm1055, %v1030
        %1089 = vst.msk [vmem:[%s218 + $0x84] sm:$0xf] %vm1055, %v1031
        %1090 = vst.msk [vmem:[%s218 + $0x88] sm:$0xf] %vm1055, %v1032
        %1091 = vst.msk [vmem:[%s218 + $0x8c] sm:$0xf] %vm1055, %v1033
        %1092 = vst.msk [vmem:[%s218 + $0x90] sm:$0xf] %vm1055, %v1034
        %1093 = vst.msk [vmem:[%s218 + $0x94] sm:$0xf] %vm1055, %v1035
        %1094 = vst.msk [vmem:[%s218 + $0x98] sm:$0xf] %vm1055, %v1036
        %1095 = vst.msk [vmem:[%s218 + $0x9c] sm:$0xf] %vm1055, %v1037
        %1096 = vst.msk [vmem:[%s218 + $0xa0] sm:$0xf] %vm1055, %v1038
        %1097 = vst.msk [vmem:[%s218 + $0xa4] sm:$0xf] %vm1055, %v1039
        %1098 = vst.msk [vmem:[%s218 + $0xa8] sm:$0xf] %vm1055, %v1040
        %1099 = vst.msk [vmem:[%s218 + $0xac] sm:$0xf] %vm1055, %v1041
        %1100 = vst.msk [vmem:[%s218 + $0xb0] sm:$0xf] %vm1055, %v1042
        %1101 = vst.msk [vmem:[%s218 + $0xb4] sm:$0xf] %vm1055, %v1043
        %1102 = vst.msk [vmem:[%s218 + $0xb8] sm:$0xf] %vm1055, %v1044
        %1103 = vst.msk [vmem:[%s218 + $0xbc] sm:$0xf] %vm1055, %v1045
        %1104 = vst.msk [vmem:[%s218 + $0xc0] sm:$0xf] %vm1055, %v1046
        %1105 = vst.msk [vmem:[%s218 + $0xc4] sm:$0xf] %vm1055, %v1047
        %1106 = vst.msk [vmem:[%s218 + $0xc8] sm:$0xf] %vm1055, %v1048
        %1107 = vst.msk [vmem:[%s218 + $0xcc] sm:$0xf] %vm1055, %v1049
        %1108 = vst.msk [vmem:[%s218 + $0xd0] sm:$0xf] %vm1055, %v1050
        %1109 = vst.msk [vmem:[%s218 + $0xd4] sm:$0xf] %vm1055, %v1051
        %1110 = vst.msk [vmem:[%s218 + $0xd8] sm:$0xf] %vm1055, %v1052
        %1111 = vst.msk [vmem:[%s218 + $0xdc] sm:$0xf] %vm1055, %v1053
        %vm1112 = vcmask 57344
        %1113 = vst.msk [vmem:[%s218 + $0xe0] sm:$0x1] %vm1112, %v1054
        %s1114 = smul.u32 57, %s20
        %p1115 = scmp.lt.s32.totalorder %s19, 1
        %s1116 = scalar_select %p1115, %s19, 1
        %p1117 = scmp.lt.s32.totalorder %s1114, 56
        %s1118 = scalar_select %p1117, %s1114, 56
        %p1119 = scmp.lt.s32.totalorder %s21, 0
        %s1120 = scalar_select %p1119, %s21, 0
        %s1121 = sadd.s32 %s1120, %s1118
        %s1122 = smul.addr %s1116, 57
        %s1123 = sadd.s32 %s1121, %s1122
        %s1124 = smul.addr %s1123, 4
        %s1125 = scalar_lea.vmem %s2, %s1124
        // Predicated region
        $region33: #{tpu_custom_call.1} parent=27 // pred_check
          %p1126 = pneg %p109
        $region34: #{tpu_custom_call.1} parent=27 // pred_check_branch
          %1128 = sbr.rel (%p1126) target = $region36
        $region35: #{tpu_custom_call.1} parent=27 // pred_region
          %s1129 = smul.u32 57, %s20
        $region36: #{tpu_custom_call.1} parent=27 // pred_fallthru
          _
      $region28: #{tpu_custom_call.1} parent=5 // pred_fallthru
        _
      %p1130 = scmp.le.s32.totalorder 2, %s9
      // Predicated region
      $region37: #{tpu_custom_call.1} parent=5 // pred_check
        %p1131 = pneg %p1130
      $region38: #{tpu_custom_call.1} parent=5 // pred_check_branch
        %1133 = sbr.rel (%p1131) target = $region40
      $region39: #{tpu_custom_call.1} parent=5 // pred_region
        %s1134 = ssub.s32 %s9, 2
        // Predicated region
        $region41: #{tpu_custom_call.1} parent=39 // pred_check
          %p1135 = pneg %p115
        $region42: #{tpu_custom_call.1} parent=39 // pred_check_branch
          %1137 = sbr.rel (%p1135) target = $region44
        $region43: #{tpu_custom_call.1} parent=39 // pred_region
          %s1138 = smul.u32 57, %s23
          %p1139 = scmp.lt.s32.totalorder %s22, 1
          %s1140 = scalar_select %p1139, %s22, 1
          %p1141 = scmp.lt.s32.totalorder %s1138, 56
          %s1142 = scalar_select %p1141, %s1138, 56
          %p1143 = scmp.lt.s32.totalorder %s24, 0
          %s1144 = scalar_select %p1143, %s24, 0
          %s1145 = sadd.s32 %s1144, %s1142
          %s1146 = smul.addr %s1140, 57
          %s1147 = sadd.s32 %s1145, %s1146
          %s1148 = smul.addr %s1147, 4
          %s1149 = scalar_lea.vmem %s2, %s1148
        $region44: #{tpu_custom_call.1} parent=39 // pred_fallthru
          _
      $region40: #{tpu_custom_call.1} parent=5 // pred_fallthru
        _
    $region6: #{tpu_custom_call.1} parent=1 // loop_footer
      %s13 = sadd.s32 1, %s9
    $region7: #{tpu_custom_call.1} parent=1 // loop_footer_branch
      %8 = sbr.rel target = $region3
    $region8: #{tpu_custom_call.1} parent=1 // loop_exit
      _
    %1150 = vsyncpa [#allocation3], 1
    %s1151 = scalar_lea.sflag [#allocation3], 1
    %1152 = vsyncpa %s1151, 1

</llo_original>
